<compile_context>
chip_gen: v6e
topology: v6e:2x2x1
jax: 0.10.0
libtpu: 0.0.40
codegen_flags: <defaults>
</compile_context>

<pallas_src>
import jax
import jax.numpy as jnp
from jax.experimental import pallas as pl
from jax.experimental.pallas import tpu as pltpu

_LANE = 128                              # TPU lane width (preferred row-width unit)
_MAX_COLS = 32768                        # cap on the collapsed row width (elements)
_SINGLE_DMA_BYTES = 1 * 1024 * 1024      # below this: one DMA, grid=(1,)
_TARGET_CHUNK_BYTES = 16 * 1024 * 1024   # ~16 MiB per DMA chunk (no VMEM cost)
_MIN_PARALLEL_CHUNKS = 8                 # >= 4 chunks per TensorCore on v7x


def _pick_cols(n_elems: int):
    """Largest multiple-of-128 divisor of n_elems (capped at _MAX_COLS), else None."""
    if n_elems % _LANE != 0:
        return None
    m = n_elems // _LANE
    for d in range(min(m, _MAX_COLS // _LANE), 0, -1):
        if m % d == 0:
            return d * _LANE
    return _LANE


def _pick_chunk_rows(rows: int, cols: int, itemsize: int) -> int:
    """Rows per DMA chunk: ~16 MiB chunks, but >= _MIN_PARALLEL_CHUNKS chunks
    for large tensors so both v7x TensorCores get work.  Small tensors
    (< 1 MiB) go out as a single DMA."""
    row_bytes = cols * itemsize
    total_bytes = rows * row_bytes
    if rows <= 1 or total_bytes <= _SINGLE_DMA_BYTES:
        return rows
    by_bytes = max(1, _TARGET_CHUNK_BYTES // row_bytes)
    by_parallel = max(1, rows // _MIN_PARALLEL_CHUNKS)
    return int(max(1, min(rows, by_bytes, by_parallel)))


def _make_dma_copy_kernel(chunk_rows: int, last_rows: int, n_chunks: int):
    """HBM->HBM identity copy: each grid step DMAs one contiguous row-chunk."""

    def kernel(x_hbm, o_hbm, sem):
        i = pl.program_id(0)

        def copy_chunk(nrows):
            start = pl.multiple_of(i * chunk_rows, chunk_rows)
            cp = pltpu.make_async_copy(
                x_hbm.at[pl.ds(start, nrows)],
                o_hbm.at[pl.ds(start, nrows)],
                sem)
            cp.start()
            cp.wait()

        if last_rows == chunk_rows:
            copy_chunk(chunk_rows)
        else:
            @pl.when(i < n_chunks - 1)
            def _():
                copy_chunk(chunk_rows)

            @pl.when(i == n_chunks - 1)
            def _():
                copy_chunk(last_rows)

    return kernel


def _hbm_identity_copy(x2d: jax.Array, chunk_rows: int) -> jax.Array:
    rows, cols = x2d.shape
    n_chunks = (rows + chunk_rows - 1) // chunk_rows
    last_rows = rows - (n_chunks - 1) * chunk_rows
    nbytes = x2d.size * jnp.dtype(x2d.dtype).itemsize
    return pl.pallas_call(
        _make_dma_copy_kernel(chunk_rows, last_rows, n_chunks),
        out_shape=jax.ShapeDtypeStruct((rows, cols), x2d.dtype),
        grid=(n_chunks,),
        # Raw HBM refs on both sides: the kernel never touches VMEM.
        in_specs=[pl.BlockSpec(memory_space=pl.ANY)],
        out_specs=pl.BlockSpec(memory_space=pl.ANY),
        scratch_shapes=[pltpu.SemaphoreType.DMA(())],
        compiler_params=pltpu.CompilerParams(
            # Disjoint chunks -> safe to shard grid steps across TensorCores.
            dimension_semantics=("parallel",)),
        cost_estimate=pl.CostEstimate(
            flops=0, transcendentals=0, bytes_accessed=2 * nbytes),
    )(x2d)


class BaseVAE:
    """JAX/Pallas mirror of the abstract PyTorch BaseVAE."""

    def __init__(self) -> None:
        # The PyTorch __init__ registers no parameters; nothing to initialize.
        pass

    def encode(self, input):
        raise NotImplementedError

    def decode(self, input):
        raise NotImplementedError

    def sample(self, batch_size, current_device, **kwargs):
        raise NotImplementedError

    def generate(self, x, **kwargs):
        raise NotImplementedError

    def loss_function(self, *inputs, **kwargs):
        # TODO(synk): abstract in the reference module; no concrete loss to port.
        raise NotImplementedError

    def forward(self, x, *, materialize: bool = True):
        # TODO(synk): forward() is @abstractmethod in the reference module; the
        # only well-defined semantics for the base class is identity on x.
        if not materialize:
            return x                      # zero-cost path: no HBM traffic at all
        if x.ndim == 0 or x.size == 0:
            return x

        n = x.size
        cols = _pick_cols(n)
        if cols is None:
            # Ragged fallback: the DMA path has no lane-alignment constraint,
            # so a flat (n, 1) view keeps every chunk contiguous and unmasked.
            rows, cols = n, 1
        else:
            rows = n // cols
        x2d = x.reshape(rows, cols)       # layout plumbing only; free under jit

        chunk_rows = _pick_chunk_rows(rows, cols, jnp.dtype(x.dtype).itemsize)
        y2d = _hbm_identity_copy(x2d, chunk_rows)
        return y2d.reshape(x.shape)

    def __call__(self, x, **kwargs):
        return self.forward(x, **kwargs)


if __name__ == "__main__":
    model = BaseVAE()

    # Primary demo: NCHW f32 tensor -> lane-dense (1, 2048) slab, one DMA.
    x = jax.random.normal(jax.random.PRNGKey(0), (2, 4, 16, 16), dtype=jnp.float32)
    y = jax.block_until_ready(model(x))
    assert y.shape == x.shape and y.dtype == x.dtype
    assert bool(jnp.array_equal(y, x)), "identity forward mismatch (f32)"

    # Zero-copy path: no materialized output requested.
    assert model(x, materialize=False) is x

    # Ragged + packed dtype: size not a multiple of 128 -> (n, 1), single DMA.
    x2 = jax.random.normal(jax.random.PRNGKey(1), (3, 2, 5, 7), dtype=jnp.bfloat16)
    y2 = jax.block_until_ready(model(x2))
    assert y2.shape == x2.shape and y2.dtype == x2.dtype
    assert bool(jnp.array_equal(y2, x2)), "identity forward mismatch (bf16)"

    # Chunked-grid path with an uneven tail (exercises both pl.when branches),
    # forced via a small chunk size so the test tensor stays tiny.
    x3 = jax.random.normal(jax.random.PRNGKey(2), (16, 256), dtype=jnp.float32)
    y3 = jax.block_until_ready(_hbm_identity_copy(x3, chunk_rows=3))
    assert bool(jnp.array_equal(y3, x3)), "identity forward mismatch (chunked)"

    print("KERNEL_OK")
</pallas_src>

<mosaic_0001>
module attributes {stable_mosaic.version = 11 : i64} {
  func.func @kernel(%arg0: i32, %arg1: memref<1x2048xf32, #tpu.memory_space<any>>, %arg2: memref<1x2048xf32, #tpu.memory_space<any>>, %arg3: memref<!tpu.dma_semaphore, #tpu.memory_space<semaphore_mem>>) attributes {dimension_semantics = [#tpu.dimension_semantics<parallel>], iteration_bounds = array<i64: 1>, scalar_prefetch = 0 : i64, scratch_operands = 1 : i64, tpu.core_type = #tpu.core_type<tc>, window_params = [{}, {}]} {
    %c1_i32 = arith.constant 1 : i32
    %0 = arith.muli %arg0, %c1_i32 : i32
    %1 = tpu.assume_multiple %0, 1 : i32
    %c0_i32 = arith.constant 0 : i32
    %2 = tpu.memref_slice %arg1[%1, %c0_i32] : memref<1x2048xf32, #tpu.memory_space<any>> -> memref<1x2048xf32, #tpu.memory_space<any>>
    %c0_i32_0 = arith.constant 0 : i32
    %3 = tpu.memref_slice %arg2[%1, %c0_i32_0] : memref<1x2048xf32, #tpu.memory_space<any>> -> memref<1x2048xf32, #tpu.memory_space<any>>
    tpu.enqueue_dma source(%2 : memref<1x2048xf32, #tpu.memory_space<any>>) target(%3 : memref<1x2048xf32, #tpu.memory_space<any>>) target_semaphore(%arg3 : memref<!tpu.dma_semaphore, #tpu.memory_space<semaphore_mem>>)
    %c0_i32_1 = arith.constant 0 : i32
    %4 = tpu.memref_slice %arg1[%1, %c0_i32_1] : memref<1x2048xf32, #tpu.memory_space<any>> -> memref<1x2048xf32, #tpu.memory_space<any>>
    %c0_i32_2 = arith.constant 0 : i32
    %5 = tpu.memref_slice %arg2[%1, %c0_i32_2] : memref<1x2048xf32, #tpu.memory_space<any>> -> memref<1x2048xf32, #tpu.memory_space<any>>
    tpu.wait_dma2 semaphore(%arg3 : memref<!tpu.dma_semaphore, #tpu.memory_space<semaphore_mem>>) src(%4 : memref<1x2048xf32, #tpu.memory_space<any>>) dst(%5 : memref<1x2048xf32, #tpu.memory_space<any>>)
    return
  }
}

</mosaic_0001>

<llo_original>
// kernel: tpu_custom_call.1
$region0: #{tpu_custom_call.1}
  #allocation0 [shape = 'u32[]', space=smem, size = 0x4, offset = 0x4, fixed_abs, tag = 'smem constant byte address 0x4 - core index']
  #allocation1 [shape = 'u32[144,128]{1,0:T(1,128)}', space=vmem, size = 0x12000, scoped, tag = 'internal scratch']
  #allocation2 [shape = 's32[1]{0}', space=sflag, size = 0x4, scoped, tag = 'scratch operand']
  #allocation3 [shape = 's32[]', space=sflag, size = 0x4, offset = 0, fixed_abs, tag = 'sflag constant byte address 0x0 - dummy sync flag']
  #allocation4 [shape = 'u32[0]{0}', space=smem, size = 0, offset = 0, fixed_abs, tag = 'smem constant byte address 0x0 - null']
  %s0 = inlined_call_operand.hbm [shape: f32[1,2048], index: 0, kind: input, shape index: {}]
  %s1 = inlined_call_operand.hbm [shape: f32[1,2048], index: 1, kind: output, shape index: {}]
  %s2 = sld [smem:[#allocation0]]
  $region2: #{tpu_custom_call.1} parent=0
    _
  %s4 = ssub.s32 1, %s2
  %s5 = scalar_select 0, %s4, %s2
  %s6 = smul.u32 0, 16
  %s7 = smul.addr %s6, 16
  %s8 = scalar_lea.hbm %s0, %s7
  %s9 = smul.addr %s6, 16
  %s10 = scalar_lea.hbm %s1, %s9
  %s12 = sshll.u32 1, 14
  %s13 = sxor.u32 4294967295, %s12
  %17 = dma.general %s8, 256, %s10, [#allocation2], 131072, [#allocation4], 0, 0
  %s18 = smul.u32 1, 16
  %s19 = sshll.u32 %s18, 4
  %20 = dma.done [#allocation2], %s19
  %21 = vsyncmov [#allocation2]
  %s22 = vpop.sfrf %21
  %p23 = scmp.eq.s32.totalorder %s22, 0
  %p24 = pneg %p23
  %26 = shalt.err (%p24)

</llo_original>
